<compile_context>
chip_gen: v6e
topology: v6e:2x2x1
jax: 0.10.0
libtpu: 0.0.40
codegen_flags: <defaults>
</compile_context>

<pallas_src>
import functools

import jax
import jax.numpy as jnp
from jax.experimental import pallas as pl
from jax.experimental.pallas import tpu as pltpu

TEMPERATURE = 0.1
INV_TEMP = 10.0  # 1 / TEMPERATURE (exact in f32)
EPS = 1e-9


def _fused_kernel(x_ref, uemb_ref, w1_ref, w2_ref, b2_ref, y_ref, loss_ref):
    # ---- encoder: two MXU matmuls with f32 accumulation ----
    h = jnp.dot(x_ref[...], w1_ref[...], preferred_element_type=jnp.float32)
    h = jnp.maximum(h + uemb_ref[...], 0.0)            # uemb_ref already includes +b1
    logits = jnp.dot(h.astype(w2_ref.dtype), w2_ref[...],
                     preferred_element_type=jnp.float32) + b2_ref[...]
    logits = logits * INV_TEMP                          # logits / temperature

    # ---- in-batch sampled softmax loss (no probs materialization) ----
    m = jnp.max(logits, axis=1, keepdims=True)          # (TB, 1)
    e = jnp.exp(logits - m)                              # (TB, N)
    denom = jnp.sum(e, axis=1, keepdims=True)            # (TB, 1)

    col = jax.lax.broadcasted_iota(jnp.int32, logits.shape, 1)
    pos_sel = col == y_ref[...]                           # (TB, N) one-hot of labels
    s_y = jnp.sum(jnp.where(pos_sel, logits, 0.0), axis=1, keepdims=True)  # logit_y
    e_y = jnp.exp(s_y - m)

    # -log( (e_y/denom) / ((denom-e_y)/denom + eps) ) == log(denom - e_y + eps*denom) - (s_y - m)
    loss_ref[...] = jnp.log(denom - e_y + EPS * denom) - (s_y - m)


@functools.partial(jax.jit, static_argnames=("compute_dtype", "tile_b"))
def in_batch_sampled_loss(img, user_id, ignore_mask, y, params,
                          compute_dtype=jnp.bfloat16, tile_b=16):
    """JAX wrapper matching InBatchSampledModel.forward(img, user_id, ignore_mask, y)."""
    del ignore_mask  # dead in the reference forward as well
    w1, b1, emb, w2, b2 = (params["w1"], params["b1"], params["emb"],
                           params["w2"], params["b2"])
    B = img.shape[0]
    D = w1.shape[0]
    HID = w1.shape[1]
    N = w2.shape[1]
    assert B % tile_b == 0, "batch must be divisible by tile_b"

    itemsize_c = jnp.dtype(compute_dtype).itemsize

    # Wrapper-side glue: flatten NCHW, cast the streamed operands, fold b1 into the
    # per-row embedding bias, gather the user embedding.
    x = img.reshape(B, D).astype(compute_dtype)
    w1c = w1.astype(compute_dtype)
    w2c = w2.astype(compute_dtype)
    uemb_b1 = (emb[user_id] + b1).astype(jnp.float32)    # (B, HID)
    b2f = b2.reshape(1, N).astype(jnp.float32)
    y2d = y.reshape(B, 1).astype(jnp.int32)

    grid = (B // tile_b,)

    block_bytes = 2 * (
        tile_b * D * itemsize_c        # x tile (double-buffered)
        + tile_b * HID * 4             # uemb tile
        + tile_b * 4 * 2               # y tile + per-row loss tile
        + D * HID * itemsize_c         # w1 (resident, constant index_map)
        + HID * N * itemsize_c         # w2 (resident)
        + N * 4                        # b2
    )
    vmem_limit = int(min(64 * 1024 * 1024, block_bytes + (16 << 20)))

    cost = pl.CostEstimate(
        flops=2 * B * D * HID + 2 * B * HID * N,
        transcendentals=B * N + 2 * B,
        bytes_accessed=(B * D * itemsize_c + B * HID * 4 + B * 4
                        + D * HID * itemsize_c + HID * N * itemsize_c
                        + N * 4 + B * 4),
    )

    per_row_loss = pl.pallas_call(
        _fused_kernel,
        out_shape=jax.ShapeDtypeStruct((B, 1), jnp.float32),
        grid_spec=pltpu.PrefetchScalarGridSpec(
            num_scalar_prefetch=0,
            grid=grid,
            in_specs=[
                pl.BlockSpec((tile_b, D), lambda i: (i, 0)),    # x: tiled over batch
                pl.BlockSpec((tile_b, HID), lambda i: (i, 0)),  # emb[user]+b1
                pl.BlockSpec((D, HID), lambda i: (0, 0)),       # w1: VMEM-resident
                pl.BlockSpec((HID, N), lambda i: (0, 0)),       # w2: VMEM-resident
                pl.BlockSpec((1, N), lambda i: (0, 0)),         # b2
                pl.BlockSpec((tile_b, 1), lambda i: (i, 0)),    # labels
            ],
            out_specs=pl.BlockSpec((tile_b, 1), lambda i: (i, 0)),
        ),
        compiler_params=pltpu.CompilerParams(
            dimension_semantics=("parallel",),                  # batch tiles independent
            vmem_limit_bytes=vmem_limit),
        cost_estimate=cost,
    )(x, uemb_b1, w1c, w2c, b2f, y2d)

    return jnp.mean(per_row_loss)


def _reference(img, user_id, ignore_mask, y, params, compute_dtype):
    """Pure-JAX reference mirroring the PyTorch forward (same compute dtype as kernel)."""
    del ignore_mask
    w1, b1, emb, w2, b2 = (params["w1"], params["b1"], params["emb"],
                           params["w2"], params["b2"])
    B = img.shape[0]
    hp = jax.lax.Precision.HIGHEST
    x = img.reshape(B, -1).astype(compute_dtype)
    h = jnp.dot(x, w1.astype(compute_dtype),
                preferred_element_type=jnp.float32, precision=hp)
    h = jnp.maximum(h + emb[user_id] + b1, 0.0)
    logits = jnp.dot(h.astype(compute_dtype), w2.astype(compute_dtype),
                     preferred_element_type=jnp.float32, precision=hp) + b2
    logits = logits / TEMPERATURE
    probs = jax.nn.softmax(logits, axis=1)
    N = logits.shape[1]
    pos_mask = (y.reshape(-1, 1) == jnp.arange(N)[None, :]).astype(jnp.float32)
    neg_sum = jnp.sum(probs * (1.0 - pos_mask), axis=1, keepdims=True)
    pos = jnp.take_along_axis(probs, y.reshape(-1, 1), axis=1)
    return jnp.mean(-jnp.log(pos / (neg_sum + EPS)))


if __name__ == "__main__":
    key = jax.random.PRNGKey(0)
    kx, ku, ky, k1, k2, k3 = jax.random.split(key, 6)

    # Small shapes consistent with the forward (image NCHW, in-batch candidates N).
    B, C, Himg, Wimg = 64, 4, 16, 16
    D = C * Himg * Wimg          # 1024 flattened image features
    HID = 128                    # encoder hidden size
    N = 256                      # number of in-batch candidates (logit dim)
    NUM_USERS = 32
    TILE_B = 16

    img = jax.random.normal(kx, (B, C, Himg, Wimg), dtype=jnp.float32)   # NCHW
    user_id = jax.random.randint(ku, (B,), 0, NUM_USERS, dtype=jnp.int32)
    ignore_mask = jnp.ones((B, 2 * N), dtype=jnp.float32)                 # unused, as in reference
    y = jax.random.randint(ky, (B,), 0, N, dtype=jnp.int32)

    params = {
        "w1": jax.random.normal(k1, (D, HID), dtype=jnp.float32) * 0.02,
        "b1": jnp.zeros((HID,), dtype=jnp.float32),
        "emb": jax.random.normal(k2, (NUM_USERS, HID), dtype=jnp.float32) * 0.02,
        "w2": jax.random.normal(k3, (HID, N), dtype=jnp.float32) * 0.02,
        "b2": jnp.zeros((N,), dtype=jnp.float32),
    }

    # Default path: bf16 streaming of the dominant HBM traffic, f32 accumulation.
    loss_bf16 = jax.block_until_ready(
        in_batch_sampled_loss(img, user_id, ignore_mask, y, params,
                              compute_dtype=jnp.bfloat16, tile_b=TILE_B))
    ref_bf16 = jax.block_until_ready(
        _reference(img, user_id, ignore_mask, y, params, jnp.bfloat16))
    assert jnp.allclose(loss_bf16, ref_bf16, atol=2e-3, rtol=2e-3), (loss_bf16, ref_bf16)

    # f32 path: exact check of the loss reformulation against the PyTorch-style math.
    loss_f32 = jax.block_until_ready(
        in_batch_sampled_loss(img, user_id, ignore_mask, y, params,
                              compute_dtype=jnp.float32, tile_b=TILE_B))
    ref_f32 = jax.block_until_ready(
        _reference(img, user_id, ignore_mask, y, params, jnp.float32))
    assert jnp.allclose(loss_f32, ref_f32, atol=2e-3, rtol=2e-3), (loss_f32, ref_f32)

    print("KERNEL_OK")
</pallas_src>

<mosaic_0001>
module attributes {stable_mosaic.version = 11 : i64} {
  func.func @_fused_kernel(%arg0: i32, %arg1: memref<16x1024xbf16, #tpu.memory_space<vmem>>, %arg2: memref<16x128xf32, #tpu.memory_space<vmem>>, %arg3: memref<1024x128xbf16, #tpu.memory_space<vmem>>, %arg4: memref<128x256xbf16, #tpu.memory_space<vmem>>, %arg5: memref<1x256xf32, #tpu.memory_space<vmem>>, %arg6: memref<16x1xi32, #tpu.memory_space<vmem>>, %arg7: memref<16x1xf32, #tpu.memory_space<vmem>>) attributes {dimension_semantics = [#tpu.dimension_semantics<parallel>], iteration_bounds = array<i64: 4>, scalar_prefetch = 0 : i64, scratch_operands = 0 : i64, tpu.core_type = #tpu.core_type<tc>, window_params = [{transform_indices = @transform_0, window_bounds = array<i64: 16, 1024>}, {transform_indices = @transform_1, window_bounds = array<i64: 16, 128>}, {pipeline_mode = #tpu.pipeline_mode<synchronous>, transform_indices = @transform_2, window_bounds = array<i64: 1024, 128>}, {pipeline_mode = #tpu.pipeline_mode<synchronous>, transform_indices = @transform_3, window_bounds = array<i64: 128, 256>}, {pipeline_mode = #tpu.pipeline_mode<synchronous>, transform_indices = @transform_4, window_bounds = array<i64: 1, 256>}, {transform_indices = @transform_5, window_bounds = array<i64: 16, 1>}, {transform_indices = @transform_6, window_bounds = array<i64: 16, 1>}]} {
    %c0 = arith.constant 0 : index
    %c0_0 = arith.constant 0 : index
    %0 = vector.load %arg1[%c0, %c0_0] : memref<16x1024xbf16, #tpu.memory_space<vmem>>, vector<16x1024xbf16>
    %c0_1 = arith.constant 0 : index
    %c0_2 = arith.constant 0 : index
    %1 = vector.load %arg3[%c0_1, %c0_2] : memref<1024x128xbf16, #tpu.memory_space<vmem>>, vector<1024x128xbf16>
    %cst = arith.constant dense<0.000000e+00> : vector<16x128xf32>
    %2 = tpu.matmul %0, %1, %cst {dimension_numbers = #tpu.dot_dimension_numbers<[1], [0], [0], [1], [0, 0, 1, 1], [], []>} : vector<16x1024xbf16>, vector<1024x128xbf16>, vector<16x128xf32> -> vector<16x128xf32>
    %c0_3 = arith.constant 0 : index
    %c0_4 = arith.constant 0 : index
    %3 = vector.load %arg2[%c0_3, %c0_4] : memref<16x128xf32, #tpu.memory_space<vmem>>, vector<16x128xf32>
    %4 = arith.addf %2, %3 : vector<16x128xf32>
    %cst_5 = arith.constant 0.000000e+00 : f32
    %5 = vector.broadcast %cst_5 : f32 to vector<16x128xf32>
    %6 = arith.maximumf %4, %5 : vector<16x128xf32>
    %7 = arith.truncf %6 : vector<16x128xf32> to vector<16x128xbf16>
    %c0_6 = arith.constant 0 : index
    %c0_7 = arith.constant 0 : index
    %8 = vector.load %arg4[%c0_6, %c0_7] : memref<128x256xbf16, #tpu.memory_space<vmem>>, vector<128x256xbf16>
    %cst_8 = arith.constant dense<0.000000e+00> : vector<16x256xf32>
    %9 = tpu.matmul %7, %8, %cst_8 {dimension_numbers = #tpu.dot_dimension_numbers<[1], [0], [0], [1], [0, 0, 1, 1], [], []>} : vector<16x128xbf16>, vector<128x256xbf16>, vector<16x256xf32> -> vector<16x256xf32>
    %c0_9 = arith.constant 0 : index
    %c0_10 = arith.constant 0 : index
    %10 = vector.load %arg5[%c0_9, %c0_10] : memref<1x256xf32, #tpu.memory_space<vmem>>, vector<1x256xf32>
    %11 = vector.broadcast %10 : vector<1x256xf32> to vector<16x256xf32>
    %12 = arith.addf %9, %11 : vector<16x256xf32>
    %cst_11 = arith.constant 1.000000e+01 : f32
    %13 = vector.broadcast %cst_11 : f32 to vector<16x256xf32>
    %14 = arith.mulf %12, %13 : vector<16x256xf32>
    %cst_12 = arith.constant dense<0xFF800000> : vector<16xf32>
    %15 = vector.multi_reduction <maximumf>, %14, %cst_12 [1] : vector<16x256xf32> to vector<16xf32>
    %16 = vector.shape_cast %15 : vector<16xf32> to vector<16x1xf32>
    %17 = vector.broadcast %16 : vector<16x1xf32> to vector<16x256xf32>
    %18 = arith.subf %14, %17 : vector<16x256xf32>
    %19 = math.exp %18 : vector<16x256xf32>
    %cst_13 = arith.constant dense<0.000000e+00> : vector<16xf32>
    %20 = vector.multi_reduction <add>, %19, %cst_13 [1] : vector<16x256xf32> to vector<16xf32>
    %21 = vector.shape_cast %20 : vector<16xf32> to vector<16x1xf32>
    %22 = tpu.iota {dimensions = array<i32: 1>} : vector<16x256xi32>
    %c0_14 = arith.constant 0 : index
    %c0_15 = arith.constant 0 : index
    %23 = vector.load %arg6[%c0_14, %c0_15] : memref<16x1xi32, #tpu.memory_space<vmem>>, vector<16x1xi32>
    %24 = vector.broadcast %23 : vector<16x1xi32> to vector<16x256xi32>
    %25 = arith.cmpi eq, %22, %24 : vector<16x256xi32>
    %cst_16 = arith.constant 0.000000e+00 : f32
    %26 = vector.broadcast %cst_16 : f32 to vector<16x256xf32>
    %27 = arith.select %25, %14, %26 : vector<16x256xi1>, vector<16x256xf32>
    %cst_17 = arith.constant dense<0.000000e+00> : vector<16xf32>
    %28 = vector.multi_reduction <add>, %27, %cst_17 [1] : vector<16x256xf32> to vector<16xf32>
    %29 = vector.shape_cast %28 : vector<16xf32> to vector<16x1xf32>
    %30 = arith.subf %29, %16 : vector<16x1xf32>
    %31 = math.exp %30 : vector<16x1xf32>
    %32 = arith.subf %21, %31 : vector<16x1xf32>
    %cst_18 = arith.constant 9.99999971E-10 : f32
    %33 = vector.broadcast %cst_18 : f32 to vector<16x1xf32>
    %34 = arith.mulf %33, %21 : vector<16x1xf32>
    %35 = arith.addf %32, %34 : vector<16x1xf32>
    %36 = math.log %35 : vector<16x1xf32>
    %37 = arith.subf %29, %16 : vector<16x1xf32>
    %38 = arith.subf %36, %37 : vector<16x1xf32>
    %c0_19 = arith.constant 0 : index
    %c0_20 = arith.constant 0 : index
    %39 = vector.load %arg7[%c0_19, %c0_20] : memref<16x1xf32, #tpu.memory_space<vmem>>, vector<16x1xf32>
    tpu.vector_store %arg7[%c0_19, %c0_20], %38 {strides = array<i32>} : memref<16x1xf32, #tpu.memory_space<vmem>>, vector<16x1xf32>,
    return
  }
  func.func @transform_0(%arg0: i32) -> (i32, i32) {
    %c0_i32 = arith.constant 0 : i32
    %c0_i32_0 = arith.constant 0 : i32
    return %arg0, %c0_i32 : i32, i32
  }
  func.func @transform_1(%arg0: i32) -> (i32, i32) {
    %c0_i32 = arith.constant 0 : i32
    %c0_i32_0 = arith.constant 0 : i32
    return %arg0, %c0_i32 : i32, i32
  }
  func.func @transform_2(%arg0: i32) -> (i32, i32) {
    %c0_i32 = arith.constant 0 : i32
    %c0_i32_0 = arith.constant 0 : i32
    %c0_i32_1 = arith.constant 0 : i32
    return %c0_i32, %c0_i32_0 : i32, i32
  }
  func.func @transform_3(%arg0: i32) -> (i32, i32) {
    %c0_i32 = arith.constant 0 : i32
    %c0_i32_0 = arith.constant 0 : i32
    %c0_i32_1 = arith.constant 0 : i32
    return %c0_i32, %c0_i32_0 : i32, i32
  }
  func.func @transform_4(%arg0: i32) -> (i32, i32) {
    %c0_i32 = arith.constant 0 : i32
    %c0_i32_0 = arith.constant 0 : i32
    %c0_i32_1 = arith.constant 0 : i32
    return %c0_i32, %c0_i32_0 : i32, i32
  }
  func.func @transform_5(%arg0: i32) -> (i32, i32) {
    %c0_i32 = arith.constant 0 : i32
    %c0_i32_0 = arith.constant 0 : i32
    return %arg0, %c0_i32 : i32, i32
  }
  func.func @transform_6(%arg0: i32) -> (i32, i32) {
    %c0_i32 = arith.constant 0 : i32
    %c0_i32_0 = arith.constant 0 : i32
    return %arg0, %c0_i32 : i32, i32
  }
}

</mosaic_0001>

<llo_original>
// kernel: in_batch_sampled_loss.1
$region0: #{in_batch_sampled_loss.1}
  #allocation0 [shape = 'u32[]', space=smem, size = 0x4, offset = 0x4, fixed_abs, tag = 'smem constant byte address 0x4 - core index']
  #allocation1 [shape = 'u32[144,128]{1,0:T(1,128)}', space=vmem, size = 0x12000, scoped, tag = 'internal scratch']
  %s0 = inlined_call_operand.vmem [shape: bf16[64,1024], index: 0, kind: input, shape index: {}]
  %s1 = inlined_call_operand.vmem [shape: f32[64,128], index: 1, kind: input, shape index: {}]
  %s2 = inlined_call_operand.vmem [shape: bf16[1024,128], index: 2, kind: input, shape index: {}]
  %s3 = inlined_call_operand.vmem [shape: bf16[128,256], index: 3, kind: input, shape index: {}]
  %s4 = inlined_call_operand.vmem [shape: f32[1,256], index: 4, kind: input, shape index: {}]
  %s5 = inlined_call_operand.vmem [shape: s32[64,1], index: 5, kind: input, shape index: {}]
  %s6 = inlined_call_operand.vmem [shape: f32[64,1], index: 6, kind: output, shape index: {}]
  %s7 = sld [smem:[#allocation0]]
  $region57: #{in_batch_sampled_loss.1} parent=0
    _
  %s9 = ssub.s32 1, %s7
  %s10 = scalar_select 0, %s9, %s7
  loop: start=0, step=1, limit=6
  $region2: #{in_batch_sampled_loss.1} parent=0 // loop_pre_header
    _
  $region3: #{in_batch_sampled_loss.1} parent=0 // loop_header
    %s12 = sphi 0, %s16
    %p13 = scmp.ge.s32.totalorder %s12, 6
    %s22 = sphi 0, %s24
    %s25 = sphi 0, %s22
    %s26 = sphi 0, %s25
    %s42 = sphi 0, %s26
    %s48 = sphi 0, %s50
    %s51 = sphi 0, %s48
    %s52 = sphi 0, %s51
    %s68 = sphi 0, %s52
    %s72 = sphi 0, %s72
    %s74 = sphi 0, %s72
    %s75 = sphi 0, %s74
    %s89 = sphi 0, %s75
    %s93 = sphi 0, %s93
    %s95 = sphi 0, %s93
    %s96 = sphi 0, %s95
    %s110 = sphi 0, %s96
    %s114 = sphi 0, %s114
    %s116 = sphi 0, %s114
    %s117 = sphi 0, %s116
    %s131 = sphi 0, %s117
    %s137 = sphi 0, %s139
    %s140 = sphi 0, %s137
    %s141 = sphi 0, %s140
    %s157 = sphi 0, %s141
    %s163 = sphi 0, %s165
    %s166 = sphi 0, %s163
    %s167 = sphi 0, %s166
    %s183 = sphi 0, %s167
  $region4: #{in_batch_sampled_loss.1} parent=0 // loop_header_branch
    %15 = sbr.rel (%p13) target = $region8
  $region5: #{in_batch_sampled_loss.1} parent=0 // loop_body
    %s17 = ssub.s32 %s12, 1
    %s18 = ssub.s32 %s12, 2
    %s19 = sadd.s32 %s12, 1
    %s20 = ssub.s32 %s12, %s19
    %p21 = scmp.eq.s32.totalorder %s20, 0
    %s23 = sadd.s32 %s22, 1
    %s24 = scalar_select %p21, %s22, %s23
    %p27 = pneg %p21
    %p28 = scmp.eq.s32.totalorder %s12, 3
    %p29 = por %p27, %p28
    %p30 = scmp.ne.s32.totalorder %s22, %s25
    %p31 = scmp.eq.s32.totalorder %s12, 0
    %p32 = por %p30, %p31
    %p33 = scmp.ne.s32.totalorder %s22, %s25
    %p34 = scmp.eq.s32.totalorder %s17, 3
    %p35 = por %p33, %p34
    %p36 = scmp.ne.s32.totalorder %s25, %s26
    %p37 = scmp.eq.s32.totalorder %s17, 0
    %p38 = por %p36, %p37
    %p39 = scmp.ne.s32.totalorder %s25, %s26
    %p40 = scmp.eq.s32.totalorder %s18, 3
    %p41 = por %p39, %p40
    %p43 = scmp.ne.s32.totalorder %s26, %s42
    %p44 = scmp.eq.s32.totalorder %s18, 0
    %p45 = por %p43, %p44
    %s46 = ssub.s32 %s12, %s19
    %p47 = scmp.eq.s32.totalorder %s46, 0
    %s49 = sadd.s32 %s48, 1
    %s50 = scalar_select %p47, %s48, %s49
    %p53 = pneg %p47
    %p54 = scmp.eq.s32.totalorder %s12, 3
    %p55 = por %p53, %p54
    %p56 = scmp.ne.s32.totalorder %s48, %s51
    %p57 = scmp.eq.s32.totalorder %s12, 0
    %p58 = por %p56, %p57
    %p59 = scmp.ne.s32.totalorder %s48, %s51
    %p60 = scmp.eq.s32.totalorder %s17, 3
    %p61 = por %p59, %p60
    %p62 = scmp.ne.s32.totalorder %s51, %s52
    %p63 = scmp.eq.s32.totalorder %s17, 0
    %p64 = por %p62, %p63
    %p65 = scmp.ne.s32.totalorder %s51, %s52
    %p66 = scmp.eq.s32.totalorder %s18, 3
    %p67 = por %p65, %p66
    %p69 = scmp.ne.s32.totalorder %s52, %s68
    %p70 = scmp.eq.s32.totalorder %s18, 0
    %p71 = por %p69, %p70
    %s73 = sadd.s32 %s72, 1
    %p76 = scmp.eq.s32.totalorder %s12, 3
    %p77 = scmp.ne.s32.totalorder %s72, %s74
    %p78 = scmp.eq.s32.totalorder %s12, 0
    %p79 = por %p77, %p78
    %p80 = scmp.ne.s32.totalorder %s72, %s74
    %p81 = scmp.eq.s32.totalorder %s17, 3
    %p82 = por %p80, %p81
    %p83 = scmp.ne.s32.totalorder %s74, %s75
    %p84 = scmp.eq.s32.totalorder %s17, 0
    %p85 = por %p83, %p84
    %p86 = scmp.ne.s32.totalorder %s74, %s75
    %p87 = scmp.eq.s32.totalorder %s18, 3
    %p88 = por %p86, %p87
    %p90 = scmp.ne.s32.totalorder %s75, %s89
    %p91 = scmp.eq.s32.totalorder %s18, 0
    %p92 = por %p90, %p91
    %s94 = sadd.s32 %s93, 1
    %p97 = scmp.eq.s32.totalorder %s12, 3
    %p98 = scmp.ne.s32.totalorder %s93, %s95
    %p99 = scmp.eq.s32.totalorder %s12, 0
    %p100 = por %p98, %p99
    %p101 = scmp.ne.s32.totalorder %s93, %s95
    %p102 = scmp.eq.s32.totalorder %s17, 3
    %p103 = por %p101, %p102
    %p104 = scmp.ne.s32.totalorder %s95, %s96
    %p105 = scmp.eq.s32.totalorder %s17, 0
    %p106 = por %p104, %p105
    %p107 = scmp.ne.s32.totalorder %s95, %s96
    %p108 = scmp.eq.s32.totalorder %s18, 3
    %p109 = por %p107, %p108
    %p111 = scmp.ne.s32.totalorder %s96, %s110
    %p112 = scmp.eq.s32.totalorder %s18, 0
    %p113 = por %p111, %p112
    %s115 = sadd.s32 %s114, 1
    %p118 = scmp.eq.s32.totalorder %s12, 3
    %p119 = scmp.ne.s32.totalorder %s114, %s116
    %p120 = scmp.eq.s32.totalorder %s12, 0
    %p121 = por %p119, %p120
    %p122 = scmp.ne.s32.totalorder %s114, %s116
    %p123 = scmp.eq.s32.totalorder %s17, 3
    %p124 = por %p122, %p123
    %p125 = scmp.ne.s32.totalorder %s116, %s117
    %p126 = scmp.eq.s32.totalorder %s17, 0
    %p127 = por %p125, %p126
    %p128 = scmp.ne.s32.totalorder %s116, %s117
    %p129 = scmp.eq.s32.totalorder %s18, 3
    %p130 = por %p128, %p129
    %p132 = scmp.ne.s32.totalorder %s117, %s131
    %p133 = scmp.eq.s32.totalorder %s18, 0
    %p134 = por %p132, %p133
    %s135 = ssub.s32 %s12, %s19
    %p136 = scmp.eq.s32.totalorder %s135, 0
    %s138 = sadd.s32 %s137, 1
    %s139 = scalar_select %p136, %s137, %s138
    %p142 = pneg %p136
    %p143 = scmp.eq.s32.totalorder %s12, 3
    %p144 = por %p142, %p143
    %p145 = scmp.ne.s32.totalorder %s137, %s140
    %p146 = scmp.eq.s32.totalorder %s12, 0
    %p147 = por %p145, %p146
    %p148 = scmp.ne.s32.totalorder %s137, %s140
    %p149 = scmp.eq.s32.totalorder %s17, 3
    %p150 = por %p148, %p149
    %p151 = scmp.ne.s32.totalorder %s140, %s141
    %p152 = scmp.eq.s32.totalorder %s17, 0
    %p153 = por %p151, %p152
    %p154 = scmp.ne.s32.totalorder %s140, %s141
    %p155 = scmp.eq.s32.totalorder %s18, 3
    %p156 = por %p154, %p155
    %p158 = scmp.ne.s32.totalorder %s141, %s157
    %p159 = scmp.eq.s32.totalorder %s18, 0
    %p160 = por %p158, %p159
    %s161 = ssub.s32 %s12, %s19
    %p162 = scmp.eq.s32.totalorder %s161, 0
    %s164 = sadd.s32 %s163, 1
    %s165 = scalar_select %p162, %s163, %s164
    %p168 = pneg %p162
    %p169 = scmp.eq.s32.totalorder %s12, 3
    %p170 = por %p168, %p169
    %p171 = scmp.ne.s32.totalorder %s163, %s166
    %p172 = scmp.eq.s32.totalorder %s12, 0
    %p173 = por %p171, %p172
    %p174 = scmp.ne.s32.totalorder %s163, %s166
    %p175 = scmp.eq.s32.totalorder %s17, 3
    %p176 = por %p174, %p175
    %p177 = scmp.ne.s32.totalorder %s166, %s167
    %p178 = scmp.eq.s32.totalorder %s17, 0
    %p179 = por %p177, %p178
    %p180 = scmp.ne.s32.totalorder %s166, %s167
    %p181 = scmp.eq.s32.totalorder %s18, 3
    %p182 = por %p180, %p181
    %p184 = scmp.ne.s32.totalorder %s167, %s183
    %p185 = scmp.eq.s32.totalorder %s18, 0
    %p186 = por %p184, %p185
    %p187 = scmp.le.s32.totalorder 1, %s12
    %p188 = scmp.lt.s32.totalorder %s12, 5
    %p189 = pnand %p187, %p188
    %p190 = pneg %p189
    // Predicated region
    $region9: #{in_batch_sampled_loss.1} parent=5 // pred_check
      _
    $region10: #{in_batch_sampled_loss.1} parent=5 // pred_check_branch
      %192 = sbr.rel (%p189) target = $region12
    $region11: #{in_batch_sampled_loss.1} parent=5 // pred_region
      %s193 = ssub.s32 %s12, 1
      // Predicated region
      $region13: #{in_batch_sampled_loss.1} parent=11 // pred_check
        %p194 = pneg %p85
      $region14: #{in_batch_sampled_loss.1} parent=11 // pred_check_branch
        %196 = sbr.rel (%p194) target = $region16
      $region15: #{in_batch_sampled_loss.1} parent=11 // pred_region
        _
      $region16: #{in_batch_sampled_loss.1} parent=11 // pred_fallthru
        _
      // Predicated region
      $region17: #{in_batch_sampled_loss.1} parent=11 // pred_check
        %p197 = pneg %p106
      $region18: #{in_batch_sampled_loss.1} parent=11 // pred_check_branch
        %199 = sbr.rel (%p197) target = $region20
      $region19: #{in_batch_sampled_loss.1} parent=11 // pred_region
        _
      $region20: #{in_batch_sampled_loss.1} parent=11 // pred_fallthru
        _
      // Predicated region
      $region21: #{in_batch_sampled_loss.1} parent=11 // pred_check
        %p200 = pneg %p127
      $region22: #{in_batch_sampled_loss.1} parent=11 // pred_check_branch
        %202 = sbr.rel (%p200) target = $region24
      $region23: #{in_batch_sampled_loss.1} parent=11 // pred_region
        _
      $region24: #{in_batch_sampled_loss.1} parent=11 // pred_fallthru
        _
    $region12: #{in_batch_sampled_loss.1} parent=5 // pred_fallthru
      _
    %p203 = scmp.lt.s32.totalorder %s12, 4
    // Predicated region
    $region25: #{in_batch_sampled_loss.1} parent=5 // pred_check
      %p204 = pneg %p203
    $region26: #{in_batch_sampled_loss.1} parent=5 // pred_check_branch
      %206 = sbr.rel (%p204) target = $region28
    $region27: #{in_batch_sampled_loss.1} parent=5 // pred_region
      // Predicated region
      $region29: #{in_batch_sampled_loss.1} parent=27 // pred_check
        %p207 = pneg %p32
      $region30: #{in_batch_sampled_loss.1} parent=27 // pred_check_branch
        %209 = sbr.rel (%p207) target = $region32
      $region31: #{in_batch_sampled_loss.1} parent=27 // pred_region
        %s210 = smul.u32 2, %s12
        %p211 = scmp.lt.s32.totalorder %s210, 7
        %s212 = scalar_select %p211, %s210, 7
        %s213 = smul.addr %s212, 8
        %s214 = smul.addr %s213, 4
        %s215 = scalar_lea.vmem %s0, %s214
        %s216 = smul.u32 2, %s12
      $region32: #{in_batch_sampled_loss.1} parent=27 // pred_fallthru
        _
      // Predicated region
      $region33: #{in_batch_sampled_loss.1} parent=27 // pred_check
        %p217 = pneg %p58
      $region34: #{in_batch_sampled_loss.1} parent=27 // pred_check_branch
        %219 = sbr.rel (%p217) target = $region36
      $region35: #{in_batch_sampled_loss.1} parent=27 // pred_region
        %s220 = smul.u32 2, %s12
        %p221 = scmp.lt.s32.totalorder %s220, 7
        %s222 = scalar_select %p221, %s220, 7
        %s223 = smul.addr %s222, 8
        %s224 = scalar_lea.vmem %s1, %s223
        %s225 = smul.u32 2, %s12
      $region36: #{in_batch_sampled_loss.1} parent=27 // pred_fallthru
        _
      // Predicated region
      $region37: #{in_batch_sampled_loss.1} parent=27 // pred_check
        %p226 = pneg %p147
      $region38: #{in_batch_sampled_loss.1} parent=27 // pred_check_branch
        %228 = sbr.rel (%p226) target = $region40
      $region39: #{in_batch_sampled_loss.1} parent=27 // pred_region
        %s229 = smul.u32 2, %s12
        %p230 = scmp.lt.s32.totalorder %s229, 7
        %s231 = scalar_select %p230, %s229, 7
        %s232 = smul.addr %s231, 8
        %s233 = scalar_lea.vmem %s5, %s232
        %s234 = smul.u32 2, %s12
      $region40: #{in_batch_sampled_loss.1} parent=27 // pred_fallthru
        _
    $region28: #{in_batch_sampled_loss.1} parent=5 // pred_fallthru
      _
    %p235 = scmp.le.s32.totalorder 1, %s12
    %p236 = scmp.lt.s32.totalorder %s12, 5
    %p237 = pnand %p235, %p236
    %p238 = pneg %p237
    // Predicated region
    $region41: #{in_batch_sampled_loss.1} parent=5 // pred_check
      _
    $region42: #{in_batch_sampled_loss.1} parent=5 // pred_check_branch
      %240 = sbr.rel (%p237) target = $region44
    $region43: #{in_batch_sampled_loss.1} parent=5 // pred_region
      %s241 = ssub.s32 %s12, 1
      %s242 = smul.u32 2, %s17
      %p243 = scmp.lt.s32.totalorder %s242, 7
      %s244 = scalar_select %p243, %s242, 7
      %s245 = smul.addr %s244, 8
      %s246 = smul.addr %s245, 4
      %s247 = scalar_lea.vmem %s0, %s246
      %p248 = pneg %p38
      %p249 = pneg %p35
      %s250 = smul.u32 2, %s17
      %p251 = scmp.lt.s32.totalorder %s250, 7
      %s252 = scalar_select %p251, %s250, 7
      %s253 = smul.addr %s252, 8
      %s254 = scalar_lea.vmem %s1, %s253
      %p255 = pneg %p64
      %p256 = pneg %p61
      %p257 = pneg %p85
      %p258 = pneg %p82
      %p259 = pneg %p106
      %p260 = pneg %p103
      %p261 = pneg %p127
      %p262 = pneg %p124
      %s263 = smul.u32 2, %s17
      %p264 = scmp.lt.s32.totalorder %s263, 7
      %s265 = scalar_select %p264, %s263, 7
      %s266 = smul.addr %s265, 8
      %s267 = scalar_lea.vmem %s5, %s266
      %p268 = pneg %p153
      %p269 = pneg %p150
      %p270 = pneg %p179
      %p271 = pneg %p176
      %s272 = smul.u32 2, %s17
      %p273 = scmp.lt.s32.totalorder %s272, 7
      %s274 = scalar_select %p273, %s272, 7
      %s275 = smul.addr %s274, 8
      %s276 = scalar_lea.vmem %s6, %s275
      %s277 = smul.u32 2, %s17
      %p278 = scmp.lt.s32.totalorder %s277, 7
      %s279 = scalar_select %p278, %s277, 7
      %s280 = smul.addr %s279, 8
      %s281 = smul.addr %s280, 4
      %s282 = scalar_lea.vmem %s0, %s281
      %s283 = smul.u32 2, %s17
      %s284 = smul.u32 2, %s17
      %p285 = scmp.lt.s32.totalorder %s284, 7
      %s286 = scalar_select %p285, %s284, 7
      %s287 = smul.addr %s286, 8
      %s288 = scalar_lea.vmem %s1, %s287
      %s289 = smul.u32 2, %s17
      %s290 = smul.u32 2, %s17
      %p291 = scmp.lt.s32.totalorder %s290, 7
      %s292 = scalar_select %p291, %s290, 7
      %s293 = smul.addr %s292, 8
      %s294 = scalar_lea.vmem %s5, %s293
      %s295 = smul.u32 2, %s17
      %s296 = smul.u32 2, %s17
      %p297 = scmp.lt.s32.totalorder %s296, 7
      %s298 = scalar_select %p297, %s296, 7
      %s299 = smul.addr %s298, 8
      %s300 = scalar_lea.vmem %s6, %s299
      %s301 = smul.u32 2, %s17
      %v303 = vld [vmem:[%s282] sm:$0xff]
      %v304 = vld [vmem:[%s282 + $0x8] sm:$0xff]
      %v305 = vld [vmem:[%s282 + $0x10] sm:$0xff]
      %v306 = vld [vmem:[%s282 + $0x18] sm:$0xff]
      %v307 = vld [vmem:[%s282 + $0x20] sm:$0xff]
      %v308 = vld [vmem:[%s282 + $0x28] sm:$0xff]
      %v309 = vld [vmem:[%s282 + $0x30] sm:$0xff]
      %v310 = vld [vmem:[%s282 + $0x38] sm:$0xff]
      %v311 = vld [vmem:[%s2] sm:$0xf]
      %v312 = vld [vmem:[%s2 + $0x4] sm:$0xf]
      %v313 = vld [vmem:[%s2 + $0x8] sm:$0xf]
      %v314 = vld [vmem:[%s2 + $0xc] sm:$0xf]
      %v315 = vld [vmem:[%s2 + $0x10] sm:$0xf]
      %v316 = vld [vmem:[%s2 + $0x14] sm:$0xf]
      %v317 = vld [vmem:[%s2 + $0x18] sm:$0xf]
      %v318 = vld [vmem:[%s2 + $0x1c] sm:$0xf]
      %v319 = vld [vmem:[%s2 + $0x20] sm:$0xf]
      %v320 = vld [vmem:[%s2 + $0x24] sm:$0xf]
      %v321 = vld [vmem:[%s2 + $0x28] sm:$0xf]
      %v322 = vld [vmem:[%s2 + $0x2c] sm:$0xf]
      %v323 = vld [vmem:[%s2 + $0x30] sm:$0xf]
      %v324 = vld [vmem:[%s2 + $0x34] sm:$0xf]
      %v325 = vld [vmem:[%s2 + $0x38] sm:$0xf]
      %v326 = vld [vmem:[%s2 + $0x3c] sm:$0xf]
      %v327 = vld [vmem:[%s2 + $0x40] sm:$0xf]
      %v328 = vld [vmem:[%s2 + $0x44] sm:$0xf]
      %v329 = vld [vmem:[%s2 + $0x48] sm:$0xf]
      %v330 = vld [vmem:[%s2 + $0x4c] sm:$0xf]
      %v331 = vld [vmem:[%s2 + $0x50] sm:$0xf]
      %v332 = vld [vmem:[%s2 + $0x54] sm:$0xf]
      %v333 = vld [vmem:[%s2 + $0x58] sm:$0xf]
      %v334 = vld [vmem:[%s2 + $0x5c] sm:$0xf]
      %v335 = vld [vmem:[%s2 + $0x60] sm:$0xf]
      %v336 = vld [vmem:[%s2 + $0x64] sm:$0xf]
      %v337 = vld [vmem:[%s2 + $0x68] sm:$0xf]
      %v338 = vld [vmem:[%s2 + $0x6c] sm:$0xf]
      %v339 = vld [vmem:[%s2 + $0x70] sm:$0xf]
      %v340 = vld [vmem:[%s2 + $0x74] sm:$0xf]
      %v341 = vld [vmem:[%s2 + $0x78] sm:$0xf]
      %v342 = vld [vmem:[%s2 + $0x7c] sm:$0xf]
      %v343 = vld [vmem:[%s2 + $0x80] sm:$0xf]
      %v344 = vld [vmem:[%s2 + $0x84] sm:$0xf]
      %v345 = vld [vmem:[%s2 + $0x88] sm:$0xf]
      %v346 = vld [vmem:[%s2 + $0x8c] sm:$0xf]
      %v347 = vld [vmem:[%s2 + $0x90] sm:$0xf]
      %v348 = vld [vmem:[%s2 + $0x94] sm:$0xf]
      %v349 = vld [vmem:[%s2 + $0x98] sm:$0xf]
      %v350 = vld [vmem:[%s2 + $0x9c] sm:$0xf]
      %v351 = vld [vmem:[%s2 + $0xa0] sm:$0xf]
      %v352 = vld [vmem:[%s2 + $0xa4] sm:$0xf]
      %v353 = vld [vmem:[%s2 + $0xa8] sm:$0xf]
      %v354 = vld [vmem:[%s2 + $0xac] sm:$0xf]
      %v355 = vld [vmem:[%s2 + $0xb0] sm:$0xf]
      %v356 = vld [vmem:[%s2 + $0xb4] sm:$0xf]
      %v357 = vld [vmem:[%s2 + $0xb8] sm:$0xf]
      %v358 = vld [vmem:[%s2 + $0xbc] sm:$0xf]
      %v359 = vld [vmem:[%s2 + $0xc0] sm:$0xf]
      %v360 = vld [vmem:[%s2 + $0xc4] sm:$0xf]
      %v361 = vld [vmem:[%s2 + $0xc8] sm:$0xf]
      %v362 = vld [vmem:[%s2 + $0xcc] sm:$0xf]
      %v363 = vld [vmem:[%s2 + $0xd0] sm:$0xf]
      %v364 = vld [vmem:[%s2 + $0xd4] sm:$0xf]
      %v365 = vld [vmem:[%s2 + $0xd8] sm:$0xf]
      %v366 = vld [vmem:[%s2 + $0xdc] sm:$0xf]
      %v367 = vld [vmem:[%s2 + $0xe0] sm:$0xf]
      %v368 = vld [vmem:[%s2 + $0xe4] sm:$0xf]
      %v369 = vld [vmem:[%s2 + $0xe8] sm:$0xf]
      %v370 = vld [vmem:[%s2 + $0xec] sm:$0xf]
      %v371 = vld [vmem:[%s2 + $0xf0] sm:$0xf]
      %v372 = vld [vmem:[%s2 + $0xf4] sm:$0xf]
      %v373 = vld [vmem:[%s2 + $0xf8] sm:$0xf]
      %v374 = vld [vmem:[%s2 + $0xfc] sm:$0xf]
      %v375 = vld [vmem:[%s2 + $0x100] sm:$0xf]
      %v376 = vld [vmem:[%s2 + $0x104] sm:$0xf]
      %v377 = vld [vmem:[%s2 + $0x108] sm:$0xf]
      %v378 = vld [vmem:[%s2 + $0x10c] sm:$0xf]
      %v379 = vld [vmem:[%s2 + $0x110] sm:$0xf]
      %v380 = vld [vmem:[%s2 + $0x114] sm:$0xf]
      %v381 = vld [vmem:[%s2 + $0x118] sm:$0xf]
      %v382 = vld [vmem:[%s2 + $0x11c] sm:$0xf]
      %v383 = vld [vmem:[%s2 + $0x120] sm:$0xf]
      %v384 = vld [vmem:[%s2 + $0x124] sm:$0xf]
      %v385 = vld [vmem:[%s2 + $0x128] sm:$0xf]
      %v386 = vld [vmem:[%s2 + $0x12c] sm:$0xf]
      %v387 = vld [vmem:[%s2 + $0x130] sm:$0xf]
      %v388 = vld [vmem:[%s2 + $0x134] sm:$0xf]
      %v389 = vld [vmem:[%s2 + $0x138] sm:$0xf]
      %v390 = vld [vmem:[%s2 + $0x13c] sm:$0xf]
      %v391 = vld [vmem:[%s2 + $0x140] sm:$0xf]
      %v392 = vld [vmem:[%s2 + $0x144] sm:$0xf]
      %v393 = vld [vmem:[%s2 + $0x148] sm:$0xf]
      %v394 = vld [vmem:[%s2 + $0x14c] sm:$0xf]
      %v395 = vld [vmem:[%s2 + $0x150] sm:$0xf]
      %v396 = vld [vmem:[%s2 + $0x154] sm:$0xf]
      %v397 = vld [vmem:[%s2 + $0x158] sm:$0xf]
      %v398 = vld [vmem:[%s2 + $0x15c] sm:$0xf]
      %v399 = vld [vmem:[%s2 + $0x160] sm:$0xf]
      %v400 = vld [vmem:[%s2 + $0x164] sm:$0xf]
      %v401 = vld [vmem:[%s2 + $0x168] sm:$0xf]
      %v402 = vld [vmem:[%s2 + $0x16c] sm:$0xf]
      %v403 = vld [vmem:[%s2 + $0x170] sm:$0xf]
      %v404 = vld [vmem:[%s2 + $0x174] sm:$0xf]
      %v405 = vld [vmem:[%s2 + $0x178] sm:$0xf]
      %v406 = vld [vmem:[%s2 + $0x17c] sm:$0xf]
      %v407 = vld [vmem:[%s2 + $0x180] sm:$0xf]
      %v408 = vld [vmem:[%s2 + $0x184] sm:$0xf]
      %v409 = vld [vmem:[%s2 + $0x188] sm:$0xf]
      %v410 = vld [vmem:[%s2 + $0x18c] sm:$0xf]
      %v411 = vld [vmem:[%s2 + $0x190] sm:$0xf]
      %v412 = vld [vmem:[%s2 + $0x194] sm:$0xf]
      %v413 = vld [vmem:[%s2 + $0x198] sm:$0xf]
      %v414 = vld [vmem:[%s2 + $0x19c] sm:$0xf]
      %v415 = vld [vmem:[%s2 + $0x1a0] sm:$0xf]
      %v416 = vld [vmem:[%s2 + $0x1a4] sm:$0xf]
      %v417 = vld [vmem:[%s2 + $0x1a8] sm:$0xf]
      %v418 = vld [vmem:[%s2 + $0x1ac] sm:$0xf]
      %v419 = vld [vmem:[%s2 + $0x1b0] sm:$0xf]
      %v420 = vld [vmem:[%s2 + $0x1b4] sm:$0xf]
      %v421 = vld [vmem:[%s2 + $0x1b8] sm:$0xf]
      %v422 = vld [vmem:[%s2 + $0x1bc] sm:$0xf]
      %v423 = vld [vmem:[%s2 + $0x1c0] sm:$0xf]
      %v424 = vld [vmem:[%s2 + $0x1c4] sm:$0xf]
      %v425 = vld [vmem:[%s2 + $0x1c8] sm:$0xf]
      %v426 = vld [vmem:[%s2 + $0x1cc] sm:$0xf]
      %v427 = vld [vmem:[%s2 + $0x1d0] sm:$0xf]
      %v428 = vld [vmem:[%s2 + $0x1d4] sm:$0xf]
      %v429 = vld [vmem:[%s2 + $0x1d8] sm:$0xf]
      %v430 = vld [vmem:[%s2 + $0x1dc] sm:$0xf]
      %v431 = vld [vmem:[%s2 + $0x1e0] sm:$0xf]
      %v432 = vld [vmem:[%s2 + $0x1e4] sm:$0xf]
      %v433 = vld [vmem:[%s2 + $0x1e8] sm:$0xf]
      %v434 = vld [vmem:[%s2 + $0x1ec] sm:$0xf]
      %v435 = vld [vmem:[%s2 + $0x1f0] sm:$0xf]
      %v436 = vld [vmem:[%s2 + $0x1f4] sm:$0xf]
      %v437 = vld [vmem:[%s2 + $0x1f8] sm:$0xf]
      %v438 = vld [vmem:[%s2 + $0x1fc] sm:$0xf]
      %v439 = vld [vmem:[%s288] sm:$0xff]
      %v440 = vld [vmem:[%s288 + $0x8] sm:$0xff]
      %v449 = vunpack.c.l.b16 %v303
      %v450 = vunpack.c.h.b16 %v303
      %v451 = vunpack.c.l.b16 %v304
      %v452 = vunpack.c.h.b16 %v304
      %v453 = vunpack.c.l.b16 %v305
      %v454 = vunpack.c.h.b16 %v305
      %v455 = vunpack.c.l.b16 %v306
      %v456 = vunpack.c.h.b16 %v306
      %v457 = vunpack.c.l.b16 %v307
      %v458 = vunpack.c.h.b16 %v307
      %v459 = vunpack.c.l.b16 %v308
      %v460 = vunpack.c.h.b16 %v308
      %v461 = vunpack.c.l.b16 %v309
      %v462 = vunpack.c.h.b16 %v309
      %v463 = vunpack.c.l.b16 %v310
      %v464 = vunpack.c.h.b16 %v310
      %v465 = vpack.c.b16 %v457, %v449
      %v466 = vpack.c.b16 %v458, %v450
      %v467 = vpack.c.b16 %v459, %v451
      %v468 = vpack.c.b16 %v460, %v452
      %v469 = vpack.c.b16 %v461, %v453
      %v470 = vpack.c.b16 %v462, %v454
      %v471 = vpack.c.b16 %v463, %v455
      %v472 = vpack.c.b16 %v464, %v456
      %v609 = vunpack.c.l.b16 %v311
      %v610 = vunpack.c.l.b16 %v312
      %v611 = vunpack.c.l.b16 %v313
      %v612 = vunpack.c.l.b16 %v314
      %v613 = vunpack.c.l.b16 %v315
      %v614 = vunpack.c.l.b16 %v316
      %v615 = vunpack.c.l.b16 %v317
      %v616 = vunpack.c.l.b16 %v318
      %v617 = vunpack.c.l.b16 %v319
      %v618 = vunpack.c.l.b16 %v320
      %v619 = vunpack.c.l.b16 %v321
      %v620 = vunpack.c.l.b16 %v322
      %v621 = vunpack.c.l.b16 %v323
      %v622 = vunpack.c.l.b16 %v324
      %v623 = vunpack.c.l.b16 %v325
      %v624 = vunpack.c.l.b16 %v326
      %v625 = vunpack.c.l.b16 %v327
      %v626 = vunpack.c.l.b16 %v328
      %v627 = vunpack.c.l.b16 %v329
      %v628 = vunpack.c.l.b16 %v330
      %v629 = vunpack.c.l.b16 %v331
      %v630 = vunpack.c.l.b16 %v332
      %v631 = vunpack.c.l.b16 %v333
      %v632 = vunpack.c.l.b16 %v334
      %v633 = vunpack.c.l.b16 %v335
      %v634 = vunpack.c.l.b16 %v336
      %v635 = vunpack.c.l.b16 %v337
      %v636 = vunpack.c.l.b16 %v338
      %v637 = vunpack.c.l.b16 %v339
      %v638 = vunpack.c.l.b16 %v340
      %v639 = vunpack.c.l.b16 %v341
      %v640 = vunpack.c.l.b16 %v342
      %v641 = vunpack.c.l.b16 %v343
      %v642 = vunpack.c.l.b16 %v344
      %v643 = vunpack.c.l.b16 %v345
      %v644 = vunpack.c.l.b16 %v346
      %v645 = vunpack.c.l.b16 %v347
      %v646 = vunpack.c.l.b16 %v348
      %v647 = vunpack.c.l.b16 %v349
      %v648 = vunpack.c.l.b16 %v350
      %v649 = vunpack.c.l.b16 %v351
      %v650 = vunpack.c.l.b16 %v352
      %v651 = vunpack.c.l.b16 %v353
      %v652 = vunpack.c.l.b16 %v354
      %v653 = vunpack.c.l.b16 %v355
      %v654 = vunpack.c.l.b16 %v356
      %v655 = vunpack.c.l.b16 %v357
      %v656 = vunpack.c.l.b16 %v358
      %v657 = vunpack.c.l.b16 %v359
      %v658 = vunpack.c.l.b16 %v360
      %v659 = vunpack.c.l.b16 %v361
      %v660 = vunpack.c.l.b16 %v362
      %v661 = vunpack.c.l.b16 %v363
      %v662 = vunpack.c.l.b16 %v364
      %v663 = vunpack.c.l.b16 %v365
      %v664 = vunpack.c.l.b16 %v366
      %v665 = vunpack.c.l.b16 %v367
      %v666 = vunpack.c.l.b16 %v368
      %v667 = vunpack.c.l.b16 %v369
      %v668 = vunpack.c.l.b16 %v370
      %v669 = vunpack.c.l.b16 %v371
      %v670 = vunpack.c.l.b16 %v372
      %v671 = vunpack.c.l.b16 %v373
      %v672 = vunpack.c.l.b16 %v374
      %v673 = vunpack.c.l.b16 %v375
      %v674 = vunpack.c.l.b16 %v376
      %v675 = vunpack.c.l.b16 %v377
      %v676 = vunpack.c.l.b16 %v378
      %v677 = vunpack.c.l.b16 %v379
      %v678 = vunpack.c.l.b16 %v380
      %v679 = vunpack.c.l.b16 %v381
      %v680 = vunpack.c.l.b16 %v382
      %v681 = vunpack.c.l.b16 %v383
      %v682 = vunpack.c.l.b16 %v384
      %v683 = vunpack.c.l.b16 %v385
      %v684 = vunpack.c.l.b16 %v386
      %v685 = vunpack.c.l.b16 %v387
      %v686 = vunpack.c.l.b16 %v388
      %v687 = vunpack.c.l.b16 %v389
      %v688 = vunpack.c.l.b16 %v390
      %v689 = vunpack.c.l.b16 %v391
      %v690 = vunpack.c.l.b16 %v392
      %v691 = vunpack.c.l.b16 %v393
      %v692 = vunpack.c.l.b16 %v394
      %v693 = vunpack.c.l.b16 %v395
      %v694 = vunpack.c.l.b16 %v396
      %v695 = vunpack.c.l.b16 %v397
      %v696 = vunpack.c.l.b16 %v398
      %v697 = vunpack.c.l.b16 %v399
      %v698 = vunpack.c.l.b16 %v400
      %v699 = vunpack.c.l.b16 %v401
      %v700 = vunpack.c.l.b16 %v402
      %v701 = vunpack.c.l.b16 %v403
      %v702 = vunpack.c.l.b16 %v404
      %v703 = vunpack.c.l.b16 %v405
      %v704 = vunpack.c.l.b16 %v406
      %v705 = vunpack.c.l.b16 %v407
      %v706 = vunpack.c.l.b16 %v408
      %v707 = vunpack.c.l.b16 %v409
      %v708 = vunpack.c.l.b16 %v410
      %v709 = vunpack.c.l.b16 %v411
      %v710 = vunpack.c.l.b16 %v412
      %v711 = vunpack.c.l.b16 %v413
      %v712 = vunpack.c.l.b16 %v414
      %v713 = vunpack.c.l.b16 %v415
      %v714 = vunpack.c.l.b16 %v416
      %v715 = vunpack.c.l.b16 %v417
      %v716 = vunpack.c.l.b16 %v418
      %v717 = vunpack.c.l.b16 %v419
      %v718 = vunpack.c.l.b16 %v420
      %v719 = vunpack.c.l.b16 %v421
      %v720 = vunpack.c.l.b16 %v422
      %v721 = vunpack.c.l.b16 %v423
      %v722 = vunpack.c.l.b16 %v424
      %v723 = vunpack.c.l.b16 %v425
      %v724 = vunpack.c.l.b16 %v426
      %v725 = vunpack.c.l.b16 %v427
      %v726 = vunpack.c.l.b16 %v428
      %v727 = vunpack.c.l.b16 %v429
      %v728 = vunpack.c.l.b16 %v430
      %v729 = vunpack.c.l.b16 %v431
      %v730 = vunpack.c.l.b16 %v432
      %v731 = vunpack.c.l.b16 %v433
      %v732 = vunpack.c.l.b16 %v434
      %v733 = vunpack.c.l.b16 %v435
      %v734 = vunpack.c.l.b16 %v436
      %v735 = vunpack.c.l.b16 %v437
      %v736 = vunpack.c.l.b16 %v438
      %v737 = vpack.c.b16 %v610, %v609
      %v738 = vpack.c.b16 %v612, %v611
      %v739 = vpack.c.b16 %v614, %v613
      %v740 = vpack.c.b16 %v616, %v615
      %v741 = vpack.c.b16 %v618, %v617
      %v742 = vpack.c.b16 %v620, %v619
      %v743 = vpack.c.b16 %v622, %v621
      %v744 = vpack.c.b16 %v624, %v623
      %v745 = vpack.c.b16 %v626, %v625
      %v746 = vpack.c.b16 %v628, %v627
      %v747 = vpack.c.b16 %v630, %v629
      %v748 = vpack.c.b16 %v632, %v631
      %v749 = vpack.c.b16 %v634, %v633
      %v750 = vpack.c.b16 %v636, %v635
      %v751 = vpack.c.b16 %v638, %v637
      %v752 = vpack.c.b16 %v640, %v639
      %v753 = vpack.c.b16 %v642, %v641
      %v754 = vpack.c.b16 %v644, %v643
      %v755 = vpack.c.b16 %v646, %v645
      %v756 = vpack.c.b16 %v648, %v647
      %v757 = vpack.c.b16 %v650, %v649
      %v758 = vpack.c.b16 %v652, %v651
      %v759 = vpack.c.b16 %v654, %v653
      %v760 = vpack.c.b16 %v656, %v655
      %v761 = vpack.c.b16 %v658, %v657
      %v762 = vpack.c.b16 %v660, %v659
      %v763 = vpack.c.b16 %v662, %v661
      %v764 = vpack.c.b16 %v664, %v663
      %v765 = vpack.c.b16 %v666, %v665
      %v766 = vpack.c.b16 %v668, %v667
      %v767 = vpack.c.b16 %v670, %v669
      %v768 = vpack.c.b16 %v672, %v671
      %v769 = vpack.c.b16 %v674, %v673
      %v770 = vpack.c.b16 %v676, %v675
      %v771 = vpack.c.b16 %v678, %v677
      %v772 = vpack.c.b16 %v680, %v679
      %v773 = vpack.c.b16 %v682, %v681
      %v774 = vpack.c.b16 %v684, %v683
      %v775 = vpack.c.b16 %v686, %v685
      %v776 = vpack.c.b16 %v688, %v687
      %v777 = vpack.c.b16 %v690, %v689
      %v778 = vpack.c.b16 %v692, %v691
      %v779 = vpack.c.b16 %v694, %v693
      %v780 = vpack.c.b16 %v696, %v695
      %v781 = vpack.c.b16 %v698, %v697
      %v782 = vpack.c.b16 %v700, %v699
      %v783 = vpack.c.b16 %v702, %v701
      %v784 = vpack.c.b16 %v704, %v703
      %v785 = vpack.c.b16 %v706, %v705
      %v786 = vpack.c.b16 %v708, %v707
      %v787 = vpack.c.b16 %v710, %v709
      %v788 = vpack.c.b16 %v712, %v711
      %v789 = vpack.c.b16 %v714, %v713
      %v790 = vpack.c.b16 %v716, %v715
      %v791 = vpack.c.b16 %v718, %v717
      %v792 = vpack.c.b16 %v720, %v719
      %v793 = vpack.c.b16 %v722, %v721
      %v794 = vpack.c.b16 %v724, %v723
      %v795 = vpack.c.b16 %v726, %v725
      %v796 = vpack.c.b16 %v728, %v727
      %v797 = vpack.c.b16 %v730, %v729
      %v798 = vpack.c.b16 %v732, %v731
      %v799 = vpack.c.b16 %v734, %v733
      %v800 = vpack.c.b16 %v736, %v735
      %865 = vmatprep.subr.bf16.mxu0 0
      %866 = vmatpush1.bf16.msra.mxu0 %v744
      %867 = vmatprep.subr.bf16.mxu0 0
      %868 = vmatpush1.bf16.msra.mxu0 %v743
      %869 = vmatprep.subr.bf16.mxu0 0
      %870 = vmatpush1.bf16.msra.mxu0 %v742
      %871 = vmatprep.subr.bf16.mxu0 0
      %872 = vmatpush1.bf16.msra.mxu0 %v741
      %873 = vmatprep.subr.bf16.mxu0 0
      %874 = vmatpush1.bf16.msra.mxu0 %v740
      %875 = vmatprep.subr.bf16.mxu0 0
      %876 = vmatpush1.bf16.msra.mxu0 %v739
      %877 = vmatprep.subr.bf16.mxu0 0
      %878 = vmatpush1.bf16.msra.mxu0 %v738
      %879 = vmatprep.subr.bf16.mxu0 0
      %880 = vmatpush1.bf16.msra.mxu0 %v737
      %881 = vmatprep.subr.bf16.mxu0 0
      %882 = vmatpush2.bf16.msra.mxu0 %v752
      %883 = vmatprep.subr.bf16.mxu0 0
      %884 = vmatpush2.bf16.msra.mxu0 %v751
      %885 = vmatprep.subr.bf16.mxu0 0
      %886 = vmatpush2.bf16.msra.mxu0 %v750
      %887 = vmatprep.subr.bf16.mxu0 0
      %888 = vmatpush2.bf16.msra.mxu0 %v749
      %889 = vmatprep.subr.bf16.mxu0 0
      %890 = vmatpush2.bf16.msra.mxu0 %v748
      %891 = vmatprep.subr.bf16.mxu0 0
      %892 = vmatpush2.bf16.msra.mxu0 %v747
      %893 = vmatprep.subr.bf16.mxu0 0
      %894 = vmatpush2.bf16.msra.mxu0 %v746
      %895 = vmatprep.subr.bf16.mxu0 0
      %896 = vmatpush2.bf16.msra.mxu0 %v745
      %897 = vmatprep.mubr.bf16.mxu0 %v466
      %898 = vmatmul.mubr.bf16.gmra.mxu0 %v465
      %v899 = vpop.f32.mrf.mxu0
      %v900 = vadd.f32 %v439, %v899
      %v901 = vpop.f32.mrf.mxu0
      %v902 = vpop.f32.mrf.mxu0
      %v903 = vadd.f32 %v440, %v902
      %v904 = vpop.f32.mrf.mxu0
      %905 = vdwg.mxu0
      %906 = vmatprep.subr.bf16.mxu0 0
      %907 = vmatpush1.bf16.msra.mxu0 %v760
      %908 = vmatprep.subr.bf16.mxu0 0
      %909 = vmatpush1.bf16.msra.mxu0 %v759
      %910 = vmatprep.subr.bf16.mxu0 0
      %911 = vmatpush1.bf16.msra.mxu0 %v758
      %912 = vmatprep.subr.bf16.mxu0 0
      %913 = vmatpush1.bf16.msra.mxu0 %v757
      %914 = vmatprep.subr.bf16.mxu0 0
      %915 = vmatpush1.bf16.msra.mxu0 %v756
      %916 = vmatprep.subr.bf16.mxu0 0
      %917 = vmatpush1.bf16.msra.mxu0 %v755
      %918 = vmatprep.subr.bf16.mxu0 0
      %919 = vmatpush1.bf16.msra.mxu0 %v754
      %920 = vmatprep.subr.bf16.mxu0 0
      %921 = vmatpush1.bf16.msra.mxu0 %v753
      %922 = vmatprep.subr.bf16.mxu0 0
      %923 = vmatpush2.bf16.msra.mxu0 %v768
      %924 = vmatprep.subr.bf16.mxu0 0
      %925 = vmatpush2.bf16.msra.mxu0 %v767
      %926 = vmatprep.subr.bf16.mxu0 0
      %927 = vmatpush2.bf16.msra.mxu0 %v766
      %928 = vmatprep.subr.bf16.mxu0 0
      %929 = vmatpush2.bf16.msra.mxu0 %v765
      %930 = vmatprep.subr.bf16.mxu0 0
      %931 = vmatpush2.bf16.msra.mxu0 %v764
      %932 = vmatprep.subr.bf16.mxu0 0
      %933 = vmatpush2.bf16.msra.mxu0 %v763
      %934 = vmatprep.subr.bf16.mxu0 0
      %935 = vmatpush2.bf16.msra.mxu0 %v762
      %936 = vmatprep.subr.bf16.mxu0 0
      %937 = vmatpush2.bf16.msra.mxu0 %v761
      %938 = vmatprep.mubr.bf16.mxu0 %v468
      %939 = vmatmul.mubr.bf16.gmra.mxu0 %v467
      %v940 = vpop.f32.mrf.mxu0
      %v941 = vadd.f32 %v900, %v940
      %v942 = vpop.f32.mrf.mxu0
      %v943 = vpop.f32.mrf.mxu0
      %v944 = vadd.f32 %v903, %v943
      %v945 = vpop.f32.mrf.mxu0
      %946 = vdwg.mxu0
      %947 = vmatprep.subr.bf16.mxu0 0
      %948 = vmatpush1.bf16.msra.mxu0 %v776
      %949 = vmatprep.subr.bf16.mxu0 0
      %950 = vmatpush1.bf16.msra.mxu0 %v775
      %951 = vmatprep.subr.bf16.mxu0 0
      %952 = vmatpush1.bf16.msra.mxu0 %v774
      %953 = vmatprep.subr.bf16.mxu0 0
      %954 = vmatpush1.bf16.msra.mxu0 %v773
      %955 = vmatprep.subr.bf16.mxu0 0
      %956 = vmatpush1.bf16.msra.mxu0 %v772
      %957 = vmatprep.subr.bf16.mxu0 0
      %958 = vmatpush1.bf16.msra.mxu0 %v771
      %959 = vmatprep.subr.bf16.mxu0 0
      %960 = vmatpush1.bf16.msra.mxu0 %v770
      %961 = vmatprep.subr.bf16.mxu0 0
      %962 = vmatpush1.bf16.msra.mxu0 %v769
      %963 = vmatprep.subr.bf16.mxu0 0
      %964 = vmatpush2.bf16.msra.mxu0 %v784
      %965 = vmatprep.subr.bf16.mxu0 0
      %966 = vmatpush2.bf16.msra.mxu0 %v783
      %967 = vmatprep.subr.bf16.mxu0 0
      %968 = vmatpush2.bf16.msra.mxu0 %v782
      %969 = vmatprep.subr.bf16.mxu0 0
      %970 = vmatpush2.bf16.msra.mxu0 %v781
      %971 = vmatprep.subr.bf16.mxu0 0
      %972 = vmatpush2.bf16.msra.mxu0 %v780
      %973 = vmatprep.subr.bf16.mxu0 0
      %974 = vmatpush2.bf16.msra.mxu0 %v779
      %975 = vmatprep.subr.bf16.mxu0 0
      %976 = vmatpush2.bf16.msra.mxu0 %v778
      %977 = vmatprep.subr.bf16.mxu0 0
      %978 = vmatpush2.bf16.msra.mxu0 %v777
      %979 = vmatprep.mubr.bf16.mxu0 %v470
      %980 = vmatmul.mubr.bf16.gmra.mxu0 %v469
      %v981 = vpop.f32.mrf.mxu0
      %v982 = vadd.f32 %v941, %v981
      %v983 = vpop.f32.mrf.mxu0
      %v984 = vpop.f32.mrf.mxu0
      %v985 = vadd.f32 %v944, %v984
      %v986 = vpop.f32.mrf.mxu0
      %987 = vdwg.mxu0
      %988 = vmatprep.subr.bf16.mxu0 0
      %989 = vmatpush1.bf16.msra.mxu0 %v792
      %990 = vmatprep.subr.bf16.mxu0 0
      %991 = vmatpush1.bf16.msra.mxu0 %v791
      %992 = vmatprep.subr.bf16.mxu0 0
      %993 = vmatpush1.bf16.msra.mxu0 %v790
      %994 = vmatprep.subr.bf16.mxu0 0
      %995 = vmatpush1.bf16.msra.mxu0 %v789
      %996 = vmatprep.subr.bf16.mxu0 0
      %997 = vmatpush1.bf16.msra.mxu0 %v788
      %998 = vmatprep.subr.bf16.mxu0 0
      %999 = vmatpush1.bf16.msra.mxu0 %v787
      %1000 = vmatprep.subr.bf16.mxu0 0
      %1001 = vmatpush1.bf16.msra.mxu0 %v786
      %1002 = vmatprep.subr.bf16.mxu0 0
      %1003 = vmatpush1.bf16.msra.mxu0 %v785
      %1004 = vmatprep.subr.bf16.mxu0 0
      %1005 = vmatpush2.bf16.msra.mxu0 %v800
      %1006 = vmatprep.subr.bf16.mxu0 0
      %1007 = vmatpush2.bf16.msra.mxu0 %v799
      %1008 = vmatprep.subr.bf16.mxu0 0
      %1009 = vmatpush2.bf16.msra.mxu0 %v798
      %1010 = vmatprep.subr.bf16.mxu0 0
      %1011 = vmatpush2.bf16.msra.mxu0 %v797
      %1012 = vmatprep.subr.bf16.mxu0 0
      %1013 = vmatpush2.bf16.msra.mxu0 %v796
      %1014 = vmatprep.subr.bf16.mxu0 0
      %1015 = vmatpush2.bf16.msra.mxu0 %v795
      %1016 = vmatprep.subr.bf16.mxu0 0
      %1017 = vmatpush2.bf16.msra.mxu0 %v794
      %1018 = vmatprep.subr.bf16.mxu0 0
      %1019 = vmatpush2.bf16.msra.mxu0 %v793
      %1020 = vmatprep.mubr.bf16.mxu0 %v472
      %1021 = vmatmul.mubr.bf16.gmra.mxu0 %v471
      %v1022 = vpop.f32.mrf.mxu0
      %v1023 = vadd.f32 %v982, %v1022
      %v1024 = vpop.f32.mrf.mxu0
      %v1025 = vpop.f32.mrf.mxu0
      %v1026 = vadd.f32 %v985, %v1025
      %v1027 = vpop.f32.mrf.mxu0
      %1028 = vdwg.mxu0
      %v1029 = vmax.f32 %v1023, 0.0
      %v1030 = vmax.f32 %v1026, 0.0
      %v1031 = vpack.c.bf16 %v1030, %v1029
      %v1032 = vld [vmem:[%s3] sm:$0xff]
      %v1033 = vld [vmem:[%s3 + $0x8] sm:$0xff]
      %v1034 = vld [vmem:[%s3 + $0x10] sm:$0xff]
      %v1035 = vld [vmem:[%s3 + $0x18] sm:$0xff]
      %v1036 = vld [vmem:[%s3 + $0x20] sm:$0xff]
      %v1037 = vld [vmem:[%s3 + $0x28] sm:$0xff]
      %v1038 = vld [vmem:[%s3 + $0x30] sm:$0xff]
      %v1039 = vld [vmem:[%s3 + $0x38] sm:$0xff]
      %v1040 = vld [vmem:[%s3 + $0x40] sm:$0xff]
      %v1041 = vld [vmem:[%s3 + $0x48] sm:$0xff]
      %v1042 = vld [vmem:[%s3 + $0x50] sm:$0xff]
      %v1043 = vld [vmem:[%s3 + $0x58] sm:$0xff]
      %v1044 = vld [vmem:[%s3 + $0x60] sm:$0xff]
      %v1045 = vld [vmem:[%s3 + $0x68] sm:$0xff]
      %v1046 = vld [vmem:[%s3 + $0x70] sm:$0xff]
      %v1047 = vld [vmem:[%s3 + $0x78] sm:$0xff]
      %v1048 = vld [vmem:[%s4] sm:$0x3]
      %v1050 = vlaneseq
      %v1051 = vshrl.u32 %v1050, 7
      %v1052 = vsub.s32 0, %v1051
      %v1053 = vrot.slane %v1048, %v1052
      %v1054 = vlaneseq
      %v1055 = vshrl.u32 %v1054, 7
      %v1056 = vsub.s32 1, %v1055
      %v1057 = vrot.slane %v1048, %v1056
      %v1076 = vunpack.c.l.b16 %v1032
      %v1077 = vunpack.c.h.b16 %v1032
      %v1078 = vunpack.c.l.b16 %v1033
      %v1079 = vunpack.c.h.b16 %v1033
      %v1080 = vunpack.c.l.b16 %v1034
      %v1081 = vunpack.c.h.b16 %v1034
      %v1082 = vunpack.c.l.b16 %v1035
      %v1083 = vunpack.c.h.b16 %v1035
      %v1084 = vunpack.c.l.b16 %v1036
      %v1085 = vunpack.c.h.b16 %v1036
      %v1086 = vunpack.c.l.b16 %v1037
      %v1087 = vunpack.c.h.b16 %v1037
      %v1088 = vunpack.c.l.b16 %v1038
      %v1089 = vunpack.c.h.b16 %v1038
      %v1090 = vunpack.c.l.b16 %v1039
      %v1091 = vunpack.c.h.b16 %v1039
      %v1092 = vunpack.c.l.b16 %v1040
      %v1093 = vunpack.c.h.b16 %v1040
      %v1094 = vunpack.c.l.b16 %v1041
      %v1095 = vunpack.c.h.b16 %v1041
      %v1096 = vunpack.c.l.b16 %v1042
      %v1097 = vunpack.c.h.b16 %v1042
      %v1098 = vunpack.c.l.b16 %v1043
      %v1099 = vunpack.c.h.b16 %v1043
      %v1100 = vunpack.c.l.b16 %v1044
      %v1101 = vunpack.c.h.b16 %v1044
      %v1102 = vunpack.c.l.b16 %v1045
      %v1103 = vunpack.c.h.b16 %v1045
      %v1104 = vunpack.c.l.b16 %v1046
      %v1105 = vunpack.c.h.b16 %v1046
      %v1106 = vunpack.c.l.b16 %v1047
      %v1107 = vunpack.c.h.b16 %v1047
      %v1108 = vpack.c.b16 %v1078, %v1076
      %v1109 = vpack.c.b16 %v1079, %v1077
      %v1110 = vpack.c.b16 %v1082, %v1080
      %v1111 = vpack.c.b16 %v1083, %v1081
      %v1112 = vpack.c.b16 %v1086, %v1084
      %v1113 = vpack.c.b16 %v1087, %v1085
      %v1114 = vpack.c.b16 %v1090, %v1088
      %v1115 = vpack.c.b16 %v1091, %v1089
      %v1116 = vpack.c.b16 %v1094, %v1092
      %v1117 = vpack.c.b16 %v1095, %v1093
      %v1118 = vpack.c.b16 %v1098, %v1096
      %v1119 = vpack.c.b16 %v1099, %v1097
      %v1120 = vpack.c.b16 %v1102, %v1100
      %v1121 = vpack.c.b16 %v1103, %v1101
      %v1122 = vpack.c.b16 %v1106, %v1104
      %v1123 = vpack.c.b16 %v1107, %v1105
      %1140 = vmatprep.subr.bf16.mxu0 %v1123
      %1141 = vmatpush1.bf16.msra.mxu0 %v1122
      %1142 = vmatprep.subr.bf16.mxu0 %v1121
      %1143 = vmatpush1.bf16.msra.mxu0 %v1120
      %1144 = vmatprep.subr.bf16.mxu0 %v1119
      %1145 = vmatpush1.bf16.msra.mxu0 %v1118
      %1146 = vmatprep.subr.bf16.mxu0 %v1117
      %1147 = vmatpush1.bf16.msra.mxu0 %v1116
      %1148 = vmatprep.subr.bf16.mxu0 %v1115
      %1149 = vmatpush1.bf16.msra.mxu0 %v1114
      %1150 = vmatprep.subr.bf16.mxu0 %v1113
      %1151 = vmatpush1.bf16.msra.mxu0 %v1112
      %1152 = vmatprep.subr.bf16.mxu0 %v1111
      %1153 = vmatpush1.bf16.msra.mxu0 %v1110
      %1154 = vmatprep.subr.bf16.mxu0 %v1109
      %1155 = vmatpush1.bf16.msra.mxu0 %v1108
      %1156 = vmatprep.subr.bf16.mxu0 0
      %1157 = vmatpush2.bf16.msra.mxu0 0
      %1158 = vmatprep.subr.bf16.mxu0 0
      %1159 = vmatpush2.bf16.msra.mxu0 0
      %1160 = vmatprep.subr.bf16.mxu0 0
      %1161 = vmatpush2.bf16.msra.mxu0 0
      %1162 = vmatprep.subr.bf16.mxu0 0
      %1163 = vmatpush2.bf16.msra.mxu0 0
      %1164 = vmatprep.subr.bf16.mxu0 0
      %1165 = vmatpush2.bf16.msra.mxu0 0
      %1166 = vmatprep.subr.bf16.mxu0 0
      %1167 = vmatpush2.bf16.msra.mxu0 0
      %1168 = vmatprep.subr.bf16.mxu0 0
      %1169 = vmatpush2.bf16.msra.mxu0 0
      %1170 = vmatprep.subr.bf16.mxu0 0
      %1171 = vmatpush2.bf16.msra.mxu0 0
      %1172 = vmatprep.mubr.bf16.mxu0 0
      %1173 = vmatmul.mubr.bf16.gmra.mxu0 %v1031
      %v1174 = vpop.f32.mrf.mxu0
      %v1175 = vadd.f32 %v1053, %v1174
      %v1176 = vpop.f32.mrf.mxu0
      %v1177 = vadd.f32 %v1057, %v1176
      %v1178 = vpop.f32.mrf.mxu0
      %v1179 = vadd.f32 %v1053, %v1178
      %v1180 = vpop.f32.mrf.mxu0
      %v1181 = vadd.f32 %v1057, %v1180
      %1182 = vdwg.mxu0
      %v1183 = vmul.f32 %v1175, 10.0
      %v1184 = vmul.f32 %v1177, 10.0
      %v1185 = vmul.f32 %v1179, 10.0
      %v1186 = vmul.f32 %v1181, 10.0
      %v1187 = vmax.f32 %v1183, %v1184
      %1188 = vmax.xlane.f32.xlu0 %v1187
      %v1189 = vpop.xlane.xlu0 %1188
      %v1190 = vmax.f32 %v1185, %v1186
      %1191 = vmax.xlane.f32.xlu0 %v1190
      %v1192 = vpop.xlane.xlu0 %1191
      %v1193 = vsub.f32 %v1183, %v1189
      %v1194 = vsub.f32 %v1184, %v1189
      %v1195 = vsub.f32 %v1185, %v1192
      %v1196 = vsub.f32 %v1186, %v1192
      %v1197 = vmul.f32 %v1193, 1.442695
      %v1198 = vpow.pop %v1197
      %v1199 = vmul.f32 %v1194, 1.442695
      %v1200 = vpow.pop %v1199
      %v1201 = vmul.f32 %v1195, 1.442695
      %v1202 = vpow.pop %v1201
      %v1203 = vmul.f32 %v1196, 1.442695
      %v1204 = vpow.pop %v1203
      %v1205 = vadd.f32 %v1198, %v1200
      %1206 = vadd.xlane.f32.xlu0 %v1205
      %v1207 = vpop.xlane.xlu0 %1206
      %v1208 = vadd.f32 %v1202, %v1204
      %1209 = vadd.xlane.f32.xlu0 %v1208
      %v1210 = vpop.xlane.xlu0 %1209
      %v1211 = vlaneseq
      %v1212 = vand.u32 %v1211, 127
      %v1213 = vadd.s32 %v1212, 128
      %v1214 = vld [vmem:[%s294] sm:$0xff]
      %v1215 = vld [vmem:[%s294 + $0x8] sm:$0xff]
      %1216 = vset.pattern.permute.xlu0 0
      %1217 = vperm.xlu0 %1216, %v1214
      %v1218 = vpop.permute.xlu0 %1217
      %1219 = vset.pattern.permute.xlu0 0
      %1220 = vperm.xlu0 %1219, %v1215
      %v1221 = vpop.permute.xlu0 %1220
      %vm1222 = vcmp.eq.s32.totalorder %v1212, %v1218
      %vm1223 = vcmp.eq.s32.totalorder %v1213, %v1218
      %vm1224 = vcmp.eq.s32.totalorder %v1212, %v1221
      %vm1225 = vcmp.eq.s32.totalorder %v1213, %v1221
      %v1226 = vsel %vm1222, %v1183, 0.0
      %v1227 = vsel %vm1223, %v1184, 0.0
      %v1228 = vsel %vm1224, %v1185, 0.0
      %v1229 = vsel %vm1225, %v1186, 0.0
      %v1230 = vadd.f32 %v1226, %v1227
      %1231 = vadd.xlane.f32.xlu0 %v1230
      %v1232 = vpop.xlane.xlu0 %1231
      %v1233 = vadd.f32 %v1228, %v1229
      %1234 = vadd.xlane.f32.xlu0 %v1233
      %v1235 = vpop.xlane.xlu0 %1234
      %v1236 = vsub.f32 %v1232, %v1189
      %v1237 = vsub.f32 %v1235, %v1192
      %v1238 = vmul.f32 %v1236, 1.442695
      %v1239 = vpow.pop %v1238
      %v1240 = vmul.f32 %v1237, 1.442695
      %v1241 = vpow.pop %v1240
      %v1242 = vsub.f32 %v1207, %v1239
      %v1243 = vsub.f32 %v1210, %v1241
      %v1244 = vmul.f32 %v1207, 1e-09
      %v1245 = vmul.f32 %v1210, 1e-09
      %v1246 = vadd.f32 %v1242, %v1244
      %v1247 = vadd.f32 %v1243, %v1245
      %v1248 = vlog2.pop %v1246
      %v1249 = vmul.f32 %v1248, 0.6931472
      %v1250 = vlog2.pop %v1247
      %v1251 = vmul.f32 %v1250, 0.6931472
      %v1252 = vsub.f32 %v1249, %v1236
      %v1253 = vsub.f32 %v1251, %v1237
      %vm1254 = vcmask 7168
      %1255 = vst.msk [vmem:[%s300] sm:$0xff] %vm1254, %v1252
      %1256 = vst.msk [vmem:[%s300 + $0x8] sm:$0xff] %vm1254, %v1253
      %s1257 = smul.u32 2, %s17
      %p1258 = scmp.lt.s32.totalorder %s1257, 7
      %s1259 = scalar_select %p1258, %s1257, 7
      %s1260 = smul.addr %s1259, 8
      %s1261 = scalar_lea.vmem %s6, %s1260
      // Predicated region
      $region45: #{in_batch_sampled_loss.1} parent=43 // pred_check
        %p1262 = pneg %p176
      $region46: #{in_batch_sampled_loss.1} parent=43 // pred_check_branch
        %1264 = sbr.rel (%p1262) target = $region48
      $region47: #{in_batch_sampled_loss.1} parent=43 // pred_region
        %s1265 = smul.u32 2, %s17
      $region48: #{in_batch_sampled_loss.1} parent=43 // pred_fallthru
        _
    $region44: #{in_batch_sampled_loss.1} parent=5 // pred_fallthru
      _
    %p1266 = scmp.le.s32.totalorder 2, %s12
    // Predicated region
    $region49: #{in_batch_sampled_loss.1} parent=5 // pred_check
      %p1267 = pneg %p1266
    $region50: #{in_batch_sampled_loss.1} parent=5 // pred_check_branch
      %1269 = sbr.rel (%p1267) target = $region52
    $region51: #{in_batch_sampled_loss.1} parent=5 // pred_region
      %s1270 = ssub.s32 %s12, 2
      // Predicated region
      $region53: #{in_batch_sampled_loss.1} parent=51 // pred_check
        %p1271 = pneg %p182
      $region54: #{in_batch_sampled_loss.1} parent=51 // pred_check_branch
        %1273 = sbr.rel (%p1271) target = $region56
      $region55: #{in_batch_sampled_loss.1} parent=51 // pred_region
        %s1274 = smul.u32 2, %s18
        %p1275 = scmp.lt.s32.totalorder %s1274, 7
        %s1276 = scalar_select %p1275, %s1274, 7
        %s1277 = smul.addr %s1276, 8
        %s1278 = scalar_lea.vmem %s6, %s1277
      $region56: #{in_batch_sampled_loss.1} parent=51 // pred_fallthru
        _
    $region52: #{in_batch_sampled_loss.1} parent=5 // pred_fallthru
      _
  $region6: #{in_batch_sampled_loss.1} parent=0 // loop_footer
    %s16 = sadd.s32 1, %s12
  $region7: #{in_batch_sampled_loss.1} parent=0 // loop_footer_branch
    %11 = sbr.rel target = $region3
  $region8: #{in_batch_sampled_loss.1} parent=0 // loop_exit
    _

</llo_original>
